<compile_context>
chip_gen: v5e
topology: v5e:2x2
jax: 0.10.0
libtpu: 0.0.40
codegen_flags: <defaults>
</compile_context>

<pallas_src>
import functools

import jax
import jax.numpy as jnp
from jax.experimental import pallas as pl
from jax.experimental.pallas import tpu as pltpu

GAMMA = 2.0            # FocalLoss default; jnp.square in the kernel assumes gamma == 2
_PAD_NEG = -1e30       # large-negative pad; exactly representable in bf16 and f32


def _round_up(x, m):
    return (x + m - 1) // m * m


# ---------------------------------------------------------------------------
# 1) MFB fusion head: Linear x2 -> elementwise product -> mean over fact_dim
#    -> L2 normalize -> classifier Linear -> softmax.
# ---------------------------------------------------------------------------
def _mfb_head_kernel(txt_ref, img_ref, wt_ref, bt_ref, wi_ref, bi_ref,
                     wc_ref, bc_ref, out_ref, acc_ref, *, fact_dim,
                     num_labels):
    k = pl.program_id(1)

    @pl.when(k == 0)
    def _init():
        acc_ref[...] = jnp.zeros_like(acc_ref)

    # bf16 (or native) operands straight into the MXU; f32 accumulation.
    t = txt_ref[...]                                    # (TB, D)
    im = img_ref[...]                                   # (TB, D)
    tp = jnp.dot(t, wt_ref[...], preferred_element_type=jnp.float32)
    tp = tp + bt_ref[0]                                 # (TB, out_pad) + (1, out_pad)
    ip = jnp.dot(im, wi_ref[...], preferred_element_type=jnp.float32)
    ip = ip + bi_ref[0]
    acc_ref[...] += ip * tp                             # mean-over-fact accumulator

    @pl.when(k == pl.num_programs(1) - 1)
    def _finalize():
        y = acc_ref[...] * (1.0 / fact_dim)             # (TB, out_pad), pad cols == 0
        ssq = jnp.sum(y * y, axis=-1, keepdims=True)
        # F.normalize(p=2, dim=1, eps=1e-12): x / max(||x||, 1e-12)
        y = y * jax.lax.rsqrt(jnp.maximum(ssq, 1e-24))
        logits = jnp.dot(y.astype(wc_ref.dtype), wc_ref[...],
                         preferred_element_type=jnp.float32)
        logits = logits + bc_ref[...]
        # mask padded label columns before softmax
        col = jax.lax.broadcasted_iota(jnp.int32, logits.shape, 1)
        logits = jnp.where(col < num_labels, logits, _PAD_NEG)
        z = logits - jnp.max(logits, axis=-1, keepdims=True)
        e = jnp.exp(z)
        out_ref[...] = (e * pl.reciprocal(jnp.sum(e, axis=-1, keepdims=True),
                                          approx=True)).astype(out_ref.dtype)


def mfb_vit_mt5_head(text_emb, image_emb, params, *, fact_dim, output_dim,
                     tile_b=128, compute_dtype=jnp.bfloat16):
    """Forward of mT5_ViT_MFB after the two backbones.

    text_emb / image_emb: (B, D) first-token embeddings.
    params: wt (D, fact*out), bt (fact*out,), wi, bi, wc (out, L), bc (L,).
    Weights/activations are cast to `compute_dtype` (bf16 default) for the
    MXU; all accumulation/normalize/softmax math is f32.
    Returns softmax probabilities (B, L) float32.
    """
    b, d = text_emb.shape
    num_labels = params["wc"].shape[1]
    out_pad = _round_up(output_dim, 128)
    labels_pad = _round_up(num_labels, 128)
    cd = jnp.dtype(compute_dtype)

    tile_b = _round_up(min(tile_b, _round_up(b, 16)), 16)
    b_pad = _round_up(b, tile_b)

    txt = jnp.pad(text_emb, ((0, b_pad - b), (0, 0))).astype(cd)
    img = jnp.pad(image_emb, ((0, b_pad - b), (0, 0))).astype(cd)

    def _prep_w(w):   # (D, fact*out) -> (D, fact*out_pad): 128-lane-aligned slabs
        w3 = w.reshape(d, fact_dim, output_dim)
        w3 = jnp.pad(w3, ((0, 0), (0, 0), (0, out_pad - output_dim)))
        return w3.reshape(d, fact_dim * out_pad).astype(cd)

    def _prep_b(bv):  # (fact*out,) -> (fact, 1, out_pad) f32, zero-padded
        b2 = bv.reshape(fact_dim, output_dim).astype(jnp.float32)
        b2 = jnp.pad(b2, ((0, 0), (0, out_pad - output_dim)))
        return b2.reshape(fact_dim, 1, out_pad)

    wt = _prep_w(params["wt"])
    bt = _prep_b(params["bt"])
    wi = _prep_w(params["wi"])
    bi = _prep_b(params["bi"])
    wc = jnp.pad(params["wc"], ((0, out_pad - output_dim),
                                (0, labels_pad - num_labels))).astype(cd)
    bc = jnp.pad(params["bc"].astype(jnp.float32),
                 (0, labels_pad - num_labels)).reshape(1, labels_pad)

    nb = b_pad // tile_b
    wb = cd.itemsize
    # Explicit VMEM budget (per-step footprint, incl. double buffering) so the
    # tiling survives v7x's 64 MiB physical VMEM as well as v5e/v6e defaults.
    slab = d * out_pad * wb
    footprint = (2 * 2 * slab                         # wt/wi slabs, 2 buffers each
                 + 2 * 2 * tile_b * d * wb            # txt/img tiles
                 + 2 * 2 * out_pad * 4                # bt/bi slabs
                 + 2 * (out_pad * labels_pad * wb + labels_pad * 4)   # wc, bc
                 + tile_b * out_pad * 4               # accumulator scratch
                 + 2 * tile_b * labels_pad * 4)       # output tile
    vmem_limit = int(min(60 << 20, footprint + (16 << 20)))

    cost = pl.CostEstimate(
        flops=int(4 * b_pad * d * fact_dim * out_pad
                  + 2 * b_pad * out_pad * labels_pad
                  + 6 * b_pad * fact_dim * out_pad),
        transcendentals=int(b_pad * labels_pad + 2 * b_pad),
        bytes_accessed=int(nb * 2 * d * fact_dim * out_pad * wb
                           + 2 * b_pad * d * wb
                           + b_pad * labels_pad * 4
                           + nb * out_pad * labels_pad * wb))

    out = pl.pallas_call(
        functools.partial(_mfb_head_kernel, fact_dim=fact_dim,
                          num_labels=num_labels),
        out_shape=jax.ShapeDtypeStruct((b_pad, labels_pad), jnp.float32),
        grid=(nb, fact_dim),
        in_specs=[
            pl.BlockSpec((tile_b, d), lambda i, k: (i, 0)),
            pl.BlockSpec((tile_b, d), lambda i, k: (i, 0)),
            pl.BlockSpec((d, out_pad), lambda i, k: (0, k)),        # wt slab k
            pl.BlockSpec((1, 1, out_pad), lambda i, k: (k, 0, 0)),  # bt slab k
            pl.BlockSpec((d, out_pad), lambda i, k: (0, k)),        # wi slab k
            pl.BlockSpec((1, 1, out_pad), lambda i, k: (k, 0, 0)),  # bi slab k
            pl.BlockSpec((out_pad, labels_pad), lambda i, k: (0, 0)),
            pl.BlockSpec((1, labels_pad), lambda i, k: (0, 0)),
        ],
        out_specs=pl.BlockSpec((tile_b, labels_pad), lambda i, k: (i, 0)),
        scratch_shapes=[pltpu.VMEM((tile_b, out_pad), jnp.float32)],
        compiler_params=pltpu.CompilerParams(
            dimension_semantics=("parallel", "arbitrary"),
            vmem_limit_bytes=vmem_limit),
        cost_estimate=cost,
    )(txt, img, wt, bt, wi, bi, wc, bc)
    return out[:b, :num_labels]


def _mfb_head_ref(text_emb, image_emb, params, *, fact_dim, output_dim):
    hp = jax.lax.Precision.HIGHEST
    tp = jnp.dot(text_emb, params["wt"], precision=hp) + params["bt"]
    ip = jnp.dot(image_emb, params["wi"], precision=hp) + params["bi"]
    m = (ip * tp).reshape(-1, fact_dim, output_dim).mean(axis=1)
    nrm = jnp.sqrt(jnp.sum(m * m, axis=1, keepdims=True))
    m = m / jnp.maximum(nrm, 1e-12)
    logits = jnp.dot(m, params["wc"], precision=hp) + params["bc"]
    return jax.nn.softmax(logits, axis=1)


# ---------------------------------------------------------------------------
# 2) FocalLoss (gamma=2, alpha=None, reduction='mean'), tiled + streaming lse.
#    Class-padding mask and target-logit gather done in the wrapper; the hot
#    loop is pure max/exp/sum per C tile.
# ---------------------------------------------------------------------------
def _focal_loss_kernel(logits_ref, xt_ref, tgt_ref, out_ref, m_sc, s_sc):
    j = pl.program_id(1)

    @pl.when(j == 0)
    def _init():
        m_sc[...] = jnp.full_like(m_sc, _PAD_NEG)
        s_sc[...] = jnp.zeros_like(s_sc)

    # native-dtype DMA (e.g. bf16); f32 math in-kernel
    x = logits_ref[...].astype(jnp.float32)                       # (TN, TC)

    # streaming (online) logsumexp over the class axis
    m_old = m_sc[...]
    m_new = jnp.maximum(m_old, jnp.max(x, axis=-1, keepdims=True))
    s_sc[...] = (s_sc[...] * jnp.exp(m_old - m_new)
                 + jnp.sum(jnp.exp(x - m_new), axis=-1, keepdims=True))
    m_sc[...] = m_new

    @pl.when(j == pl.num_programs(1) - 1)
    def _finalize():
        m = m_sc[...]
        s = s_sc[...]
        x_t = xt_ref[...]                                   # wrapper-gathered
        lse = m + jnp.log(s)
        ce = jnp.maximum(lse - x_t, 0.0)                    # clamp >= 0
        pt = jnp.exp(x_t - m) * pl.reciprocal(s, approx=True)
        focal = jnp.square(1.0 - pt) * ce                   # gamma == 2
        focal = jnp.where(tgt_ref[...] >= 0, focal, 0.0)    # ignore_index / pad rows
        psum = jnp.sum(focal)
        r = jax.lax.broadcasted_iota(jnp.int32, out_ref.shape, 0)
        c = jax.lax.broadcasted_iota(jnp.int32, out_ref.shape, 1)
        out_ref[...] = jnp.where((r == 0) & (c == 0), psum, 0.0)


def focal_loss(logits, targets, *, tile_n=256, tile_c=2048):
    """Mean focal loss over (N, C) logits, (N,) int targets.

    Targets < 0 (e.g. -100 padding) contribute zero loss but still count in
    the divisor, matching F.cross_entropy(reduction='none').mean().
    """
    n, c = logits.shape
    tile_n = _round_up(min(tile_n, _round_up(n, 16)), 16)
    if _round_up(n, tile_n) // tile_n < 2 and tile_n > 16:
        # guarantee >= 2 N tiles so both v7x TensorCores get work
        tile_n = max(16, _round_up(tile_n // 2, 16))
    tile_c = min(tile_c, _round_up(c, 128))
    n_pad = _round_up(n, tile_n)
    c_pad = _round_up(c, tile_c)

    tgt_i32 = targets.astype(jnp.int32)
    # target-logit gather moved out of the kernel (O(N), negligible)
    x_t = jnp.take_along_axis(logits, jnp.clip(tgt_i32, 0, c - 1)[:, None],
                              axis=-1).astype(jnp.float32)

    # pad class axis (and N rows) with a large negative in the native dtype
    lp = jnp.pad(logits, ((0, n_pad - n), (0, c_pad - c)),
                 constant_values=_PAD_NEG)
    xt = jnp.pad(x_t, ((0, n_pad - n), (0, 0)), constant_values=_PAD_NEG)
    tp = jnp.pad(tgt_i32.reshape(n, 1), ((0, n_pad - n), (0, 0)),
                 constant_values=-1)

    n_tiles = n_pad // tile_n
    c_tiles = c_pad // tile_c
    itemsize = jnp.dtype(logits.dtype).itemsize

    partials = pl.pallas_call(
        _focal_loss_kernel,
        out_shape=jax.ShapeDtypeStruct((n_tiles * 8, 128), jnp.float32),
        grid=(n_tiles, c_tiles),
        in_specs=[
            pl.BlockSpec((tile_n, tile_c), lambda i, j: (i, j)),
            pl.BlockSpec((tile_n, 1), lambda i, j: (i, 0)),
            pl.BlockSpec((tile_n, 1), lambda i, j: (i, 0)),
        ],
        out_specs=pl.BlockSpec((8, 128), lambda i, j: (i, 0)),
        scratch_shapes=[pltpu.VMEM((tile_n, 1), jnp.float32)] * 2,
        compiler_params=pltpu.CompilerParams(
            dimension_semantics=("parallel", "arbitrary"),
            vmem_limit_bytes=int(min(
                60 << 20, 2 * tile_n * tile_c * itemsize + (8 << 20)))),
        cost_estimate=pl.CostEstimate(
            flops=int(5 * n_pad * c_pad),
            transcendentals=int(n_pad * c_pad),
            bytes_accessed=int(n_pad * c_pad * itemsize + n_pad * 8
                               + n_tiles * 8 * 128 * 4)),
    )(lp, xt, tp)
    # per-N-tile lane-dense partial sums -> final mean in XLA.
    # TODO(synk): divisor is the full N (ignored rows still counted), matching
    # F.cross_entropy(reduction='none').mean() in the source file.
    return jnp.sum(partials) / jnp.float32(n)


def _focal_loss_ref(logits, targets):
    x = logits.astype(jnp.float32)
    n, c = x.shape
    lse = jax.scipy.special.logsumexp(x, axis=-1)
    idx = jnp.clip(targets, 0, c - 1).astype(jnp.int32)
    x_t = jnp.take_along_axis(x, idx[:, None], axis=-1)[:, 0]
    ce = jnp.where(targets < 0, 0.0, lse - x_t)     # ignore_index behaviour
    pt = jnp.exp(-ce)
    return jnp.mean((1.0 - pt) ** GAMMA * ce)


if __name__ == "__main__":
    key = jax.random.PRNGKey(0)
    (k_txt, k_img, k_wt, k_bt, k_wi, k_bi, k_wc, k_bc,
     k_log, k_tgt) = jax.random.split(key, 10)

    # ---- MFB fusion head (scaled-down 768/16/1000/6 -> 128/8/256/8) ----
    B, D, FACT, OUT, LABELS = 12, 128, 8, 256, 8
    text_emb = jax.random.normal(k_txt, (B, D), jnp.float32)
    image_emb = jax.random.normal(k_img, (B, D), jnp.float32)
    params = {
        "wt": jax.random.normal(k_wt, (D, FACT * OUT), jnp.float32) * 0.05,
        "bt": jax.random.normal(k_bt, (FACT * OUT,), jnp.float32) * 0.05,
        "wi": jax.random.normal(k_wi, (D, FACT * OUT), jnp.float32) * 0.05,
        "bi": jax.random.normal(k_bi, (FACT * OUT,), jnp.float32) * 0.05,
        "wc": jax.random.normal(k_wc, (OUT, LABELS), jnp.float32) * 0.1,
        "bc": jax.random.normal(k_bc, (LABELS,), jnp.float32) * 0.1,
    }
    probs_ref = jax.block_until_ready(
        _mfb_head_ref(text_emb, image_emb, params,
                      fact_dim=FACT, output_dim=OUT))

    # default bf16 MXU path (expected small precision drift vs f32 reference)
    probs_bf = jax.block_until_ready(
        mfb_vit_mt5_head(text_emb, image_emb, params,
                         fact_dim=FACT, output_dim=OUT))
    assert probs_bf.shape == (B, LABELS)
    assert bool(jnp.all(jnp.isfinite(probs_bf)))
    assert bool(jnp.allclose(jnp.sum(probs_bf, axis=1), 1.0, atol=3e-3))
    assert bool(jnp.allclose(probs_bf, probs_ref, atol=2e-2)), (
        float(jnp.max(jnp.abs(probs_bf - probs_ref))))

    # f32 compute path (tight tolerance)
    probs_f32 = jax.block_until_ready(
        mfb_vit_mt5_head(text_emb, image_emb, params, fact_dim=FACT,
                         output_dim=OUT, compute_dtype=jnp.float32))
    assert bool(jnp.allclose(probs_f32, probs_ref, atol=3e-3)), (
        float(jnp.max(jnp.abs(probs_f32 - probs_ref))))

    # ---- FocalLoss: exercises N/C tiling, padding, ignore_index, bf16 ----
    N, C = 24, 160
    logits_f32 = jax.random.normal(k_log, (N, C), jnp.float32)
    targets = jax.random.randint(k_tgt, (N,), 0, C, dtype=jnp.int32)
    targets = targets.at[3].set(-100)               # padding label (ignored)

    loss = jax.block_until_ready(
        focal_loss(logits_f32, targets, tile_n=16, tile_c=128))
    loss_ref = jax.block_until_ready(_focal_loss_ref(logits_f32, targets))
    assert bool(jnp.isfinite(loss))
    assert abs(float(loss) - float(loss_ref)) < 2e-3, (
        float(loss), float(loss_ref))

    logits_bf16 = logits_f32.astype(jnp.bfloat16)   # native-dtype DMA path
    loss_bf = jax.block_until_ready(
        focal_loss(logits_bf16, targets, tile_n=16, tile_c=128))
    loss_bf_ref = jax.block_until_ready(_focal_loss_ref(logits_bf16, targets))
    assert abs(float(loss_bf) - float(loss_bf_ref)) < 2e-3, (
        float(loss_bf), float(loss_bf_ref))

    print("KERNEL_OK")
</pallas_src>

<mosaic_0001>
module attributes {stable_mosaic.version = 11 : i64} {
  func.func @_mfb_head_kernel(%arg0: i32, %arg1: i32, %arg2: memref<16x128xbf16, #tpu.memory_space<vmem>>, %arg3: memref<16x128xbf16, #tpu.memory_space<vmem>>, %arg4: memref<128x256xbf16, #tpu.memory_space<vmem>>, %arg5: memref<1x1x256xf32, #tpu.memory_space<vmem>>, %arg6: memref<128x256xbf16, #tpu.memory_space<vmem>>, %arg7: memref<1x1x256xf32, #tpu.memory_space<vmem>>, %arg8: memref<256x128xbf16, #tpu.memory_space<vmem>>, %arg9: memref<1x128xf32, #tpu.memory_space<vmem>>, %arg10: memref<16x128xf32, #tpu.memory_space<vmem>>, %arg11: memref<16x256xf32, #tpu.memory_space<vmem>>) attributes {dimension_semantics = [#tpu.dimension_semantics<parallel>, #tpu.dimension_semantics<arbitrary>], iteration_bounds = array<i64: 1, 8>, scalar_prefetch = 0 : i64, scratch_operands = 1 : i64, tpu.core_type = #tpu.core_type<tc>, window_params = [{transform_indices = @transform_0, window_bounds = array<i64: 16, 128>}, {transform_indices = @transform_1, window_bounds = array<i64: 16, 128>}, {transform_indices = @transform_2, window_bounds = array<i64: 128, 256>}, {transform_indices = @transform_3, window_bounds = array<i64: 1, 1, 256>}, {transform_indices = @transform_4, window_bounds = array<i64: 128, 256>}, {transform_indices = @transform_5, window_bounds = array<i64: 1, 1, 256>}, {pipeline_mode = #tpu.pipeline_mode<synchronous>, transform_indices = @transform_6, window_bounds = array<i64: 256, 128>}, {pipeline_mode = #tpu.pipeline_mode<synchronous>, transform_indices = @transform_7, window_bounds = array<i64: 1, 128>}, {transform_indices = @transform_8, window_bounds = array<i64: 16, 128>}]} {
    %c0_i32 = arith.constant 0 : i32
    %0 = arith.cmpi eq, %arg1, %c0_i32 : i32
    %1 = arith.extui %0 : i1 to i32
    %c0_i32_0 = arith.constant 0 : i32
    %2 = arith.cmpi ne, %1, %c0_i32_0 : i32
    scf.if %2 {
      %cst_20 = arith.constant 0.000000e+00 : f32
      %24 = vector.broadcast %cst_20 : f32 to vector<16x256xf32>
      %c0_21 = arith.constant 0 : index
      %c0_22 = arith.constant 0 : index
      %25 = vector.load %arg11[%c0_21, %c0_22] : memref<16x256xf32, #tpu.memory_space<vmem>>, vector<16x256xf32>
      tpu.vector_store %arg11[%c0_21, %c0_22], %24 {strides = array<i32>} : memref<16x256xf32, #tpu.memory_space<vmem>>, vector<16x256xf32>,
    } else {
    }
    %c0 = arith.constant 0 : index
    %c0_1 = arith.constant 0 : index
    %3 = vector.load %arg2[%c0, %c0_1] : memref<16x128xbf16, #tpu.memory_space<vmem>>, vector<16x128xbf16>
    %c0_2 = arith.constant 0 : index
    %c0_3 = arith.constant 0 : index
    %4 = vector.load %arg3[%c0_2, %c0_3] : memref<16x128xbf16, #tpu.memory_space<vmem>>, vector<16x128xbf16>
    %c0_4 = arith.constant 0 : index
    %c0_5 = arith.constant 0 : index
    %5 = vector.load %arg4[%c0_4, %c0_5] : memref<128x256xbf16, #tpu.memory_space<vmem>>, vector<128x256xbf16>
    %cst = arith.constant dense<0.000000e+00> : vector<16x256xf32>
    %6 = tpu.matmul %3, %5, %cst {dimension_numbers = #tpu.dot_dimension_numbers<[1], [0], [0], [1], [0, 0, 1, 1], [], []>} : vector<16x128xbf16>, vector<128x256xbf16>, vector<16x256xf32> -> vector<16x256xf32>
    %c0_6 = arith.constant 0 : index
    %c0_7 = arith.constant 0 : index
    %c0_8 = arith.constant 0 : index
    %7 = vector.load %arg5[%c0_6, %c0_7, %c0_8] : memref<1x1x256xf32, #tpu.memory_space<vmem>>, vector<1x1x256xf32>
    %8 = vector.shape_cast %7 : vector<1x1x256xf32> to vector<1x256xf32>
    %9 = vector.broadcast %8 : vector<1x256xf32> to vector<16x256xf32>
    %10 = arith.addf %6, %9 : vector<16x256xf32>
    %c0_9 = arith.constant 0 : index
    %c0_10 = arith.constant 0 : index
    %11 = vector.load %arg6[%c0_9, %c0_10] : memref<128x256xbf16, #tpu.memory_space<vmem>>, vector<128x256xbf16>
    %cst_11 = arith.constant dense<0.000000e+00> : vector<16x256xf32>
    %12 = tpu.matmul %4, %11, %cst_11 {dimension_numbers = #tpu.dot_dimension_numbers<[1], [0], [0], [1], [0, 0, 1, 1], [], []>} : vector<16x128xbf16>, vector<128x256xbf16>, vector<16x256xf32> -> vector<16x256xf32>
    %c0_12 = arith.constant 0 : index
    %c0_13 = arith.constant 0 : index
    %c0_14 = arith.constant 0 : index
    %13 = vector.load %arg7[%c0_12, %c0_13, %c0_14] : memref<1x1x256xf32, #tpu.memory_space<vmem>>, vector<1x1x256xf32>
    %14 = vector.shape_cast %13 : vector<1x1x256xf32> to vector<1x256xf32>
    %15 = vector.broadcast %14 : vector<1x256xf32> to vector<16x256xf32>
    %16 = arith.addf %12, %15 : vector<16x256xf32>
    %c0_15 = arith.constant 0 : index
    %c0_16 = arith.constant 0 : index
    %17 = vector.load %arg11[%c0_15, %c0_16] : memref<16x256xf32, #tpu.memory_space<vmem>>, vector<16x256xf32>
    %18 = arith.mulf %16, %10 : vector<16x256xf32>
    %19 = arith.addf %17, %18 : vector<16x256xf32>
    %c0_17 = arith.constant 0 : index
    %c0_18 = arith.constant 0 : index
    %20 = vector.load %arg11[%c0_17, %c0_18] : memref<16x256xf32, #tpu.memory_space<vmem>>, vector<16x256xf32>
    tpu.vector_store %arg11[%c0_17, %c0_18], %19 {strides = array<i32>} : memref<16x256xf32, #tpu.memory_space<vmem>>, vector<16x256xf32>,
    %c7_i32 = arith.constant 7 : i32
    %21 = arith.cmpi eq, %arg1, %c7_i32 : i32
    %22 = arith.extui %21 : i1 to i32
    %c0_i32_19 = arith.constant 0 : i32
    %23 = arith.cmpi ne, %22, %c0_i32_19 : i32
    scf.if %23 {
      %c0_20 = arith.constant 0 : index
      %c0_21 = arith.constant 0 : index
      %24 = vector.load %arg11[%c0_20, %c0_21] : memref<16x256xf32, #tpu.memory_space<vmem>>, vector<16x256xf32>
      %cst_22 = arith.constant 1.250000e-01 : f32
      %25 = vector.broadcast %cst_22 : f32 to vector<16x256xf32>
      %26 = arith.mulf %24, %25 : vector<16x256xf32>
      %27 = arith.mulf %26, %26 : vector<16x256xf32>
      %cst_23 = arith.constant dense<0.000000e+00> : vector<16xf32>
      %28 = vector.multi_reduction <add>, %27, %cst_23 [1] : vector<16x256xf32> to vector<16xf32>
      %29 = vector.shape_cast %28 : vector<16xf32> to vector<16x1xf32>
      %cst_24 = arith.constant 1.000000e-24 : f32
      %30 = vector.broadcast %cst_24 : f32 to vector<16x1xf32>
      %31 = arith.maximumf %29, %30 : vector<16x1xf32>
      %32 = math.rsqrt %31 : vector<16x1xf32>
      %33 = vector.broadcast %32 : vector<16x1xf32> to vector<16x256xf32>
      %34 = arith.mulf %26, %33 : vector<16x256xf32>
      %35 = arith.truncf %34 : vector<16x256xf32> to vector<16x256xbf16>
      %c0_25 = arith.constant 0 : index
      %c0_26 = arith.constant 0 : index
      %36 = vector.load %arg8[%c0_25, %c0_26] : memref<256x128xbf16, #tpu.memory_space<vmem>>, vector<256x128xbf16>
      %cst_27 = arith.constant dense<0.000000e+00> : vector<16x128xf32>
      %37 = tpu.matmul %35, %36, %cst_27 {dimension_numbers = #tpu.dot_dimension_numbers<[1], [0], [0], [1], [0, 0, 1, 1], [], []>} : vector<16x256xbf16>, vector<256x128xbf16>, vector<16x128xf32> -> vector<16x128xf32>
      %c0_28 = arith.constant 0 : index
      %c0_29 = arith.constant 0 : index
      %38 = vector.load %arg9[%c0_28, %c0_29] : memref<1x128xf32, #tpu.memory_space<vmem>>, vector<1x128xf32>
      %39 = vector.broadcast %38 : vector<1x128xf32> to vector<16x128xf32>
      %40 = arith.addf %37, %39 : vector<16x128xf32>
      %41 = tpu.iota {dimensions = array<i32: 1>} : vector<16x128xi32>
      %c8_i32 = arith.constant 8 : i32
      %42 = vector.broadcast %c8_i32 : i32 to vector<16x128xi32>
      %43 = arith.cmpi slt, %41, %42 : vector<16x128xi32>
      %cst_30 = arith.constant -1.000000e+30 : f32
      %44 = vector.broadcast %cst_30 : f32 to vector<16x128xf32>
      %45 = arith.select %43, %40, %44 : vector<16x128xi1>, vector<16x128xf32>
      %cst_31 = arith.constant dense<0xFF800000> : vector<16xf32>
      %46 = vector.multi_reduction <maximumf>, %45, %cst_31 [1] : vector<16x128xf32> to vector<16xf32>
      %47 = vector.shape_cast %46 : vector<16xf32> to vector<16x1xf32>
      %48 = vector.broadcast %47 : vector<16x1xf32> to vector<16x128xf32>
      %49 = arith.subf %45, %48 : vector<16x128xf32>
      %50 = math.exp %49 : vector<16x128xf32>
      %cst_32 = arith.constant dense<0.000000e+00> : vector<16xf32>
      %51 = vector.multi_reduction <add>, %50, %cst_32 [1] : vector<16x128xf32> to vector<16xf32>
      %52 = vector.shape_cast %51 : vector<16xf32> to vector<16x1xf32>
      %53 = tpu.reciprocal %52 {approx = true} : vector<16x1xf32> -> vector<16x1xf32>
      %54 = vector.broadcast %53 : vector<16x1xf32> to vector<16x128xf32>
      %55 = arith.mulf %50, %54 : vector<16x128xf32>
      %c0_33 = arith.constant 0 : index
      %c0_34 = arith.constant 0 : index
      %56 = vector.load %arg10[%c0_33, %c0_34] : memref<16x128xf32, #tpu.memory_space<vmem>>, vector<16x128xf32>
      tpu.vector_store %arg10[%c0_33, %c0_34], %55 {strides = array<i32>} : memref<16x128xf32, #tpu.memory_space<vmem>>, vector<16x128xf32>,
    } else {
    }
    return
  }
  func.func @transform_0(%arg0: i32, %arg1: i32) -> (i32, i32) {
    %c0_i32 = arith.constant 0 : i32
    %c0_i32_0 = arith.constant 0 : i32
    return %arg0, %c0_i32 : i32, i32
  }
  func.func @transform_1(%arg0: i32, %arg1: i32) -> (i32, i32) {
    %c0_i32 = arith.constant 0 : i32
    %c0_i32_0 = arith.constant 0 : i32
    return %arg0, %c0_i32 : i32, i32
  }
  func.func @transform_2(%arg0: i32, %arg1: i32) -> (i32, i32) {
    %c0_i32 = arith.constant 0 : i32
    %c0_i32_0 = arith.constant 0 : i32
    return %c0_i32, %arg1 : i32, i32
  }
  func.func @transform_3(%arg0: i32, %arg1: i32) -> (i32, i32, i32) {
    %c0_i32 = arith.constant 0 : i32
    %c0_i32_0 = arith.constant 0 : i32
    %c0_i32_1 = arith.constant 0 : i32
    return %arg1, %c0_i32, %c0_i32_0 : i32, i32, i32
  }
  func.func @transform_4(%arg0: i32, %arg1: i32) -> (i32, i32) {
    %c0_i32 = arith.constant 0 : i32
    %c0_i32_0 = arith.constant 0 : i32
    return %c0_i32, %arg1 : i32, i32
  }
  func.func @transform_5(%arg0: i32, %arg1: i32) -> (i32, i32, i32) {
    %c0_i32 = arith.constant 0 : i32
    %c0_i32_0 = arith.constant 0 : i32
    %c0_i32_1 = arith.constant 0 : i32
    return %arg1, %c0_i32, %c0_i32_0 : i32, i32, i32
  }
  func.func @transform_6(%arg0: i32, %arg1: i32) -> (i32, i32) {
    %c0_i32 = arith.constant 0 : i32
    %c0_i32_0 = arith.constant 0 : i32
    %c0_i32_1 = arith.constant 0 : i32
    return %c0_i32, %c0_i32_0 : i32, i32
  }
  func.func @transform_7(%arg0: i32, %arg1: i32) -> (i32, i32) {
    %c0_i32 = arith.constant 0 : i32
    %c0_i32_0 = arith.constant 0 : i32
    %c0_i32_1 = arith.constant 0 : i32
    return %c0_i32, %c0_i32_0 : i32, i32
  }
  func.func @transform_8(%arg0: i32, %arg1: i32) -> (i32, i32) {
    %c0_i32 = arith.constant 0 : i32
    %c0_i32_0 = arith.constant 0 : i32
    return %arg0, %c0_i32 : i32, i32
  }
}

</mosaic_0001>

<llo_original>
// kernel: tpu_custom_call.1
$region0: #{tpu_custom_call.1}
  #allocation0 [shape = 'u32[]', space=smem, size = 0x4, offset = 0x4, fixed_abs, tag = 'smem constant byte address 0x4 - core index']
  #allocation1 [shape = 'u32[72,128]{1,0:T(1,128)}', space=vmem, size = 0x9000, scoped, tag = 'internal scratch']
  #allocation2 [shape = 'f32[16,256]{1,0:T(8,128)}', space=vmem, size = 0x4000, scoped, tag = 'scratch operand']
  %s0 = inlined_call_operand.hbm [shape: bf16[16,128], index: 0, kind: input, shape index: {}]
  %s1 = inlined_call_operand.hbm [shape: bf16[16,128], index: 1, kind: input, shape index: {}]
  %s2 = inlined_call_operand.hbm [shape: bf16[128,2048], index: 2, kind: input, shape index: {}]
  %s3 = inlined_call_operand.hbm [shape: f32[8,1,256], index: 3, kind: input, shape index: {}]
  %s4 = inlined_call_operand.hbm [shape: bf16[128,2048], index: 4, kind: input, shape index: {}]
  %s5 = inlined_call_operand.hbm [shape: f32[8,1,256], index: 5, kind: input, shape index: {}]
  %s6 = inlined_call_operand.hbm [shape: bf16[256,128], index: 6, kind: input, shape index: {}]
  %s7 = inlined_call_operand.vmem [shape: f32[1,128], index: 7, kind: input, shape index: {}]
  %s8 = inlined_call_operand.hbm [shape: f32[16,128], index: 8, kind: output, shape index: {}]
  %s9 = sld [smem:[#allocation0]]
  $region101: #{tpu_custom_call.1} parent=0
    _
  %s11 = ssub.s32 1, %s9
  %s12 = scalar_select 0, %s11, %s9
  $region1: #{tpu_custom_call.1} parent=0
    #allocation3 [shape = 'u8[4096]{0}', space=vmem, size = 0x1000, scoped, tag = 'input window, operand 0, single buffered']
    #allocation4 [shape = 's32[2]{0}', space=sflag, size = 0x8, scoped, tag = 'scoped memory for tpu_custom_call.1']
    #allocation5 [shape = 's32[2]{0}', space=sflag, size = 0x8, scoped, tag = 'scoped memory for tpu_custom_call.1']
    #allocation6 [shape = 'u8[4096]{0}', space=vmem, size = 0x1000, scoped, tag = 'input window, operand 1, single buffered']
    #allocation7 [shape = 's32[1]{0}', space=sflag, size = 0x4, scoped, tag = 'scoped memory for tpu_custom_call.1']
    #allocation8 [shape = 'u8[131072]{0}', space=vmem, size = 0x20000, scoped, tag = 'input window, operand 2']
    #allocation9 [shape = 'u8[2048]{0}', space=vmem, size = 0x800, scoped, tag = 'input window, operand 3']
    #allocation10 [shape = 'u8[131072]{0}', space=vmem, size = 0x20000, scoped, tag = 'input window, operand 4']
    #allocation11 [shape = 'u8[2048]{0}', space=vmem, size = 0x800, scoped, tag = 'input window, operand 5']
    #allocation12 [shape = 'u8[65536]{0}', space=vmem, size = 0x10000, scoped, tag = 'input window, operand 6, single buffered']
    #allocation13 [shape = 'u8[8192]{0}', space=vmem, size = 0x2000, scoped, tag = 'output window, operand 0, single buffered']
    %13 = vsyncpa [#allocation4], 0
    %14 = vsyncpa [#allocation7], 0
    %15 = vsyncpa [#allocation5], 0
    loop: start=0, step=1, limit=10
    $region2: #{tpu_custom_call.1} parent=1 // loop_pre_header
      _
    $region3: #{tpu_custom_call.1} parent=1 // loop_header
      %s17 = sphi 0, %s21
      %p18 = scmp.ge.s32.totalorder %s17, 10
      %s24 = sphi 0, %s36
      %s25 = sphi 0, %s32
      %s26 = sphi 0, %s24
      %s27 = sphi 0, %s25
      %s28 = sphi 0, %s26
      %s29 = sphi 0, %s27
      %s39 = sphi 0, %s41
      %s42 = sphi 0, %s39
      %s43 = sphi 0, %s42
      %s59 = sphi 0, %s43
      %s65 = sphi 0, %s67
      %s68 = sphi 0, %s65
      %s69 = sphi 0, %s68
      %s85 = sphi 0, %s69
      %s91 = sphi 0, %s93
      %s94 = sphi 0, %s91
      %s95 = sphi 0, %s94
      %s111 = sphi 0, %s95
      %s117 = sphi 0, %s119
      %s120 = sphi 0, %s117
      %s121 = sphi 0, %s120
      %s137 = sphi 0, %s121
      %s143 = sphi 0, %s145
      %s146 = sphi 0, %s143
      %s147 = sphi 0, %s146
      %s163 = sphi 0, %s147
      %s169 = sphi 0, %s171
      %s172 = sphi 0, %s169
      %s173 = sphi 0, %s172
      %s189 = sphi 0, %s173
      %s193 = sphi 0, %s193
      %s195 = sphi 0, %s193
      %s196 = sphi 0, %s195
      %s210 = sphi 0, %s196
      %s214 = sphi 0, %s214
      %s216 = sphi 0, %s214
      %s217 = sphi 0, %s216
      %s231 = sphi 0, %s217
      %s237 = sphi 0, %s239
      %s240 = sphi 0, %s237
      %s241 = sphi 0, %s240
      %s257 = sphi 0, %s241
    $region4: #{tpu_custom_call.1} parent=1 // loop_header_branch
      %20 = sbr.rel (%p18) target = $region8
    $region5: #{tpu_custom_call.1} parent=1 // loop_body
      %s22 = ssub.s32 %s17, 1
      %s23 = ssub.s32 %s17, 2
      %s30 = sadd.s32 1, %s25
      %p31 = scmp.ge.s32.totalorder %s30, 8
      %s32 = scalar_select %p31, 0, %s30
      %s33 = sadd.s32 1, %s24
      %s34 = scalar_select %p31, %s33, %s24
      %p35 = scmp.ge.s32.totalorder %s34, 1
      %s36 = scalar_select %p35, 0, %s34
      %s37 = ssub.s32 %s24, %s36
      %p38 = scmp.eq.s32.totalorder %s37, 0
      %s40 = sadd.s32 %s39, 1
      %s41 = scalar_select %p38, %s39, %s40
      %p44 = pneg %p38
      %p45 = scmp.eq.s32.totalorder %s17, 7
      %p46 = por %p44, %p45
      %p47 = scmp.ne.s32.totalorder %s39, %s42
      %p48 = scmp.eq.s32.totalorder %s17, 0
      %p49 = por %p47, %p48
      %p50 = scmp.ne.s32.totalorder %s39, %s42
      %p51 = scmp.eq.s32.totalorder %s22, 7
      %p52 = por %p50, %p51
      %p53 = scmp.ne.s32.totalorder %s42, %s43
      %p54 = scmp.eq.s32.totalorder %s22, 0
      %p55 = por %p53, %p54
      %p56 = scmp.ne.s32.totalorder %s42, %s43
      %p57 = scmp.eq.s32.totalorder %s23, 7
      %p58 = por %p56, %p57
      %p60 = scmp.ne.s32.totalorder %s43, %s59
      %p61 = scmp.eq.s32.totalorder %s23, 0
      %p62 = por %p60, %p61
      %s63 = ssub.s32 %s24, %s36
      %p64 = scmp.eq.s32.totalorder %s63, 0
      %s66 = sadd.s32 %s65, 1
      %s67 = scalar_select %p64, %s65, %s66
      %p70 = pneg %p64
      %p71 = scmp.eq.s32.totalorder %s17, 7
      %p72 = por %p70, %p71
      %p73 = scmp.ne.s32.totalorder %s65, %s68
      %p74 = scmp.eq.s32.totalorder %s17, 0
      %p75 = por %p73, %p74
      %p76 = scmp.ne.s32.totalorder %s65, %s68
      %p77 = scmp.eq.s32.totalorder %s22, 7
      %p78 = por %p76, %p77
      %p79 = scmp.ne.s32.totalorder %s68, %s69
      %p80 = scmp.eq.s32.totalorder %s22, 0
      %p81 = por %p79, %p80
      %p82 = scmp.ne.s32.totalorder %s68, %s69
      %p83 = scmp.eq.s32.totalorder %s23, 7
      %p84 = por %p82, %p83
      %p86 = scmp.ne.s32.totalorder %s69, %s85
      %p87 = scmp.eq.s32.totalorder %s23, 0
      %p88 = por %p86, %p87
      %s89 = ssub.s32 %s25, %s32
      %p90 = scmp.eq.s32.totalorder %s89, 0
      %s92 = sadd.s32 %s91, 1
      %s93 = scalar_select %p90, %s91, %s92
      %p96 = pneg %p90
      %p97 = scmp.eq.s32.totalorder %s17, 7
      %p98 = por %p96, %p97
      %p99 = scmp.ne.s32.totalorder %s91, %s94
      %p100 = scmp.eq.s32.totalorder %s17, 0
      %p101 = por %p99, %p100
      %p102 = scmp.ne.s32.totalorder %s91, %s94
      %p103 = scmp.eq.s32.totalorder %s22, 7
      %p104 = por %p102, %p103
      %p105 = scmp.ne.s32.totalorder %s94, %s95
      %p106 = scmp.eq.s32.totalorder %s22, 0
      %p107 = por %p105, %p106
      %p108 = scmp.ne.s32.totalorder %s94, %s95
      %p109 = scmp.eq.s32.totalorder %s23, 7
      %p110 = por %p108, %p109
      %p112 = scmp.ne.s32.totalorder %s95, %s111
      %p113 = scmp.eq.s32.totalorder %s23, 0
      %p114 = por %p112, %p113
      %s115 = ssub.s32 %s25, %s32
      %p116 = scmp.eq.s32.totalorder %s115, 0
      %s118 = sadd.s32 %s117, 1
      %s119 = scalar_select %p116, %s117, %s118
      %p122 = pneg %p116
      %p123 = scmp.eq.s32.totalorder %s17, 7
      %p124 = por %p122, %p123
      %p125 = scmp.ne.s32.totalorder %s117, %s120
      %p126 = scmp.eq.s32.totalorder %s17, 0
      %p127 = por %p125, %p126
      %p128 = scmp.ne.s32.totalorder %s117, %s120
      %p129 = scmp.eq.s32.totalorder %s22, 7
      %p130 = por %p128, %p129
      %p131 = scmp.ne.s32.totalorder %s120, %s121
      %p132 = scmp.eq.s32.totalorder %s22, 0
      %p133 = por %p131, %p132
      %p134 = scmp.ne.s32.totalorder %s120, %s121
      %p135 = scmp.eq.s32.totalorder %s23, 7
      %p136 = por %p134, %p135
      %p138 = scmp.ne.s32.totalorder %s121, %s137
      %p139 = scmp.eq.s32.totalorder %s23, 0
      %p140 = por %p138, %p139
      %s141 = ssub.s32 %s25, %s32
      %p142 = scmp.eq.s32.totalorder %s141, 0
      %s144 = sadd.s32 %s143, 1
      %s145 = scalar_select %p142, %s143, %s144
      %p148 = pneg %p142
      %p149 = scmp.eq.s32.totalorder %s17, 7
      %p150 = por %p148, %p149
      %p151 = scmp.ne.s32.totalorder %s143, %s146
      %p152 = scmp.eq.s32.totalorder %s17, 0
      %p153 = por %p151, %p152
      %p154 = scmp.ne.s32.totalorder %s143, %s146
      %p155 = scmp.eq.s32.totalorder %s22, 7
      %p156 = por %p154, %p155
      %p157 = scmp.ne.s32.totalorder %s146, %s147
      %p158 = scmp.eq.s32.totalorder %s22, 0
      %p159 = por %p157, %p158
      %p160 = scmp.ne.s32.totalorder %s146, %s147
      %p161 = scmp.eq.s32.totalorder %s23, 7
      %p162 = por %p160, %p161
      %p164 = scmp.ne.s32.totalorder %s147, %s163
      %p165 = scmp.eq.s32.totalorder %s23, 0
      %p166 = por %p164, %p165
      %s167 = ssub.s32 %s25, %s32
      %p168 = scmp.eq.s32.totalorder %s167, 0
      %s170 = sadd.s32 %s169, 1
      %s171 = scalar_select %p168, %s169, %s170
      %p174 = pneg %p168
      %p175 = scmp.eq.s32.totalorder %s17, 7
      %p176 = por %p174, %p175
      %p177 = scmp.ne.s32.totalorder %s169, %s172
      %p178 = scmp.eq.s32.totalorder %s17, 0
      %p179 = por %p177, %p178
      %p180 = scmp.ne.s32.totalorder %s169, %s172
      %p181 = scmp.eq.s32.totalorder %s22, 7
      %p182 = por %p180, %p181
      %p183 = scmp.ne.s32.totalorder %s172, %s173
      %p184 = scmp.eq.s32.totalorder %s22, 0
      %p185 = por %p183, %p184
      %p186 = scmp.ne.s32.totalorder %s172, %s173
      %p187 = scmp.eq.s32.totalorder %s23, 7
      %p188 = por %p186, %p187
      %p190 = scmp.ne.s32.totalorder %s173, %s189
      %p191 = scmp.eq.s32.totalorder %s23, 0
      %p192 = por %p190, %p191
      %s194 = sadd.s32 %s193, 1
      %p197 = scmp.eq.s32.totalorder %s17, 7
      %p198 = scmp.ne.s32.totalorder %s193, %s195
      %p199 = scmp.eq.s32.totalorder %s17, 0
      %p200 = por %p198, %p199
      %p201 = scmp.ne.s32.totalorder %s193, %s195
      %p202 = scmp.eq.s32.totalorder %s22, 7
      %p203 = por %p201, %p202
      %p204 = scmp.ne.s32.totalorder %s195, %s196
      %p205 = scmp.eq.s32.totalorder %s22, 0
      %p206 = por %p204, %p205
      %p207 = scmp.ne.s32.totalorder %s195, %s196
      %p208 = scmp.eq.s32.totalorder %s23, 7
      %p209 = por %p207, %p208
      %p211 = scmp.ne.s32.totalorder %s196, %s210
      %p212 = scmp.eq.s32.totalorder %s23, 0
      %p213 = por %p211, %p212
      %s215 = sadd.s32 %s214, 1
      %p218 = scmp.eq.s32.totalorder %s17, 7
      %p219 = scmp.ne.s32.totalorder %s214, %s216
      %p220 = scmp.eq.s32.totalorder %s17, 0
      %p221 = por %p219, %p220
      %p222 = scmp.ne.s32.totalorder %s214, %s216
      %p223 = scmp.eq.s32.totalorder %s22, 7
      %p224 = por %p222, %p223
      %p225 = scmp.ne.s32.totalorder %s216, %s217
      %p226 = scmp.eq.s32.totalorder %s22, 0
      %p227 = por %p225, %p226
      %p228 = scmp.ne.s32.totalorder %s216, %s217
      %p229 = scmp.eq.s32.totalorder %s23, 7
      %p230 = por %p228, %p229
      %p232 = scmp.ne.s32.totalorder %s217, %s231
      %p233 = scmp.eq.s32.totalorder %s23, 0
      %p234 = por %p232, %p233
      %s235 = ssub.s32 %s24, %s36
      %p236 = scmp.eq.s32.totalorder %s235, 0
      %s238 = sadd.s32 %s237, 1
      %s239 = scalar_select %p236, %s237, %s238
      %p242 = pneg %p236
      %p243 = scmp.eq.s32.totalorder %s17, 7
      %p244 = por %p242, %p243
      %p245 = scmp.ne.s32.totalorder %s237, %s240
      %p246 = scmp.eq.s32.totalorder %s17, 0
      %p247 = por %p245, %p246
      %p248 = scmp.ne.s32.totalorder %s237, %s240
      %p249 = scmp.eq.s32.totalorder %s22, 7
      %p250 = por %p248, %p249
      %p251 = scmp.ne.s32.totalorder %s240, %s241
      %p252 = scmp.eq.s32.totalorder %s22, 0
      %p253 = por %p251, %p252
      %p254 = scmp.ne.s32.totalorder %s240, %s241
      %p255 = scmp.eq.s32.totalorder %s23, 7
      %p256 = por %p254, %p255
      %p258 = scmp.ne.s32.totalorder %s241, %s257
      %p259 = scmp.eq.s32.totalorder %s23, 0
      %p260 = por %p258, %p259
      %p261 = scmp.le.s32.totalorder 1, %s17
      %p262 = scmp.lt.s32.totalorder %s17, 9
      %p263 = pnand %p261, %p262
      %p264 = pneg %p263
      // Predicated region
      $region9: #{tpu_custom_call.1} parent=5 // pred_check
        _
      $region10: #{tpu_custom_call.1} parent=5 // pred_check_branch
        %266 = sbr.rel (%p263) target = $region12
      $region11: #{tpu_custom_call.1} parent=5 // pred_region
        %s267 = ssub.s32 %s17, 1
        // Predicated region
        $region13: #{tpu_custom_call.1} parent=11 // pred_check
          %p268 = pneg %p55
        $region14: #{tpu_custom_call.1} parent=11 // pred_check_branch
          %270 = sbr.rel (%p268) target = $region16
        $region15: #{tpu_custom_call.1} parent=11 // pred_region
          %s271 = smul.u32 2, %s26
          %273 = vsyncadd [#allocation4], 0
          %s274 = smul.addr %s271, 4
          %s275 = scalar_lea.hbm %s0, %s274
          %s276 = sshll.u32 %s275, 4
          %s277 = int_to_ptr.hbm [resolvable:$true] %s276
          %s278 = sshll.u32 [#allocation3], 4
          %s279 = int_to_ptr.vmem [resolvable:$true] %s278
          %284 = dma.hbm_to_vmem [thread:$0]  %s277, 128, %s279, [#allocation4], 64, 64, 4
        $region16: #{tpu_custom_call.1} parent=11 // pred_fallthru
          _
        // Predicated region
        $region17: #{tpu_custom_call.1} parent=11 // pred_check
          %p285 = pneg %p81
        $region18: #{tpu_custom_call.1} parent=11 // pred_check_branch
          %287 = sbr.rel (%p285) target = $region20
        $region19: #{tpu_custom_call.1} parent=11 // pred_region
          %s288 = smul.u32 2, %s26
          %290 = vsyncadd [#allocation7], 0
          %s291 = smul.addr %s288, 4
          %s292 = scalar_lea.hbm %s1, %s291
          %s293 = sshll.u32 %s292, 4
          %s294 = int_to_ptr.hbm [resolvable:$true] %s293
          %s295 = sshll.u32 [#allocation6], 4
          %s296 = int_to_ptr.vmem [resolvable:$true] %s295
          %301 = dma.hbm_to_vmem [thread:$0]  %s294, 128, %s296, [#allocation7], 64, 64, 4
        $region20: #{tpu_custom_call.1} parent=11 // pred_fallthru
          _
        // Predicated region
        $region21: #{tpu_custom_call.1} parent=11 // pred_check
          %p302 = pneg %p206
        $region22: #{tpu_custom_call.1} parent=11 // pred_check_branch
          %304 = sbr.rel (%p302) target = $region24
        $region23: #{tpu_custom_call.1} parent=11 // pred_region
          %306 = vsyncadd [#allocation7], 0
          %s307 = sshll.u32 %s6, 4
          %s308 = int_to_ptr.hbm [resolvable:$true] %s307
          %s309 = sshll.u32 [#allocation12], 4
          %s310 = int_to_ptr.vmem [resolvable:$true] %s309
          %315 = dma.hbm_to_vmem [thread:$0]  %s308, 2048, %s310, [#allocation7], 64, 64, 4
        $region24: #{tpu_custom_call.1} parent=11 // pred_fallthru
          _
        // Predicated region
        $region25: #{tpu_custom_call.1} parent=11 // pred_check
          %p316 = pneg %p227
        $region26: #{tpu_custom_call.1} parent=11 // pred_check_branch
          %318 = sbr.rel (%p316) target = $region28
        $region27: #{tpu_custom_call.1} parent=11 // pred_region
          _
        $region28: #{tpu_custom_call.1} parent=11 // pred_fallthru
          _
      $region12: #{tpu_custom_call.1} parent=5 // pred_fallthru
        _
      %p319 = scmp.lt.s32.totalorder %s17, 8
      // Predicated region
      $region29: #{tpu_custom_call.1} parent=5 // pred_check
        %p320 = pneg %p319
      $region30: #{tpu_custom_call.1} parent=5 // pred_check_branch
        %322 = sbr.rel (%p320) target = $region32
      $region31: #{tpu_custom_call.1} parent=5 // pred_region
        // Predicated region
        $region33: #{tpu_custom_call.1} parent=31 // pred_check
          %p323 = pneg %p101
        $region34: #{tpu_custom_call.1} parent=31 // pred_check_branch
          %325 = sbr.rel (%p323) target = $region36
        $region35: #{tpu_custom_call.1} parent=31 // pred_region
          %s326 = sand.u32 %s17, 1
          %s327 = scalar_lea.sflag [#allocation4], %s326
          %s328 = sand.u32 %s91, 1
          %s329 = smul.addr %s328, 128
          %s330 = scalar_lea.vmem [#allocation8], %s329
          %s331 = smul.u32 2, %s25
          %333 = vsyncadd %s327, 0
          %s334 = smul.addr %s331, 4
          %s335 = scalar_lea.hbm %s2, %s334
          %s336 = sshll.u32 %s335, 4
          %s337 = int_to_ptr.hbm [resolvable:$true] %s336
          %s338 = sshll.u32 %s330, 4
          %s339 = int_to_ptr.vmem [resolvable:$true] %s338
          %344 = dma.hbm_to_vmem [thread:$0]  %s337, 2048, %s339, %s327, 1024, 128, 8
        $region36: #{tpu_custom_call.1} parent=31 // pred_fallthru
          _
        // Predicated region
        $region37: #{tpu_custom_call.1} parent=31 // pred_check
          %p345 = pneg %p127
        $region38: #{tpu_custom_call.1} parent=31 // pred_check_branch
          %347 = sbr.rel (%p345) target = $region40
        $region39: #{tpu_custom_call.1} parent=31 // pred_region
          %s348 = sand.u32 %s17, 1
          %s349 = scalar_lea.sflag [#allocation4], %s348
          %s350 = sand.u32 %s117, 1
          %s351 = smul.addr %s350, 2
          %s352 = scalar_lea.vmem [#allocation9], %s351
          %354 = vsyncadd %s349, 0
          %s355 = smul.addr %s25, 2
          %s356 = scalar_lea.hbm %s3, %s355
          %s358 = sshll.u32 %s356, 4
          %s359 = int_to_ptr.hbm [resolvable:$true] %s358
          %s360 = sshll.u32 %s352, 4
          %s361 = int_to_ptr.vmem [resolvable:$true] %s360
          %363 = dma.hbm_to_vmem [thread:$0]  %s359, 32, %s361, %s349
        $region40: #{tpu_custom_call.1} parent=31 // pred_fallthru
          _
        // Predicated region
        $region41: #{tpu_custom_call.1} parent=31 // pred_check
          %p364 = pneg %p153
        $region42: #{tpu_custom_call.1} parent=31 // pred_check_branch
          %366 = sbr.rel (%p364) target = $region44
        $region43: #{tpu_custom_call.1} parent=31 // pred_region
          %s367 = sand.u32 %s17, 1
          %s368 = scalar_lea.sflag [#allocation4], %s367
          %s369 = sand.u32 %s143, 1
          %s370 = smul.addr %s369, 128
          %s371 = scalar_lea.vmem [#allocation10], %s370
          %s372 = smul.u32 2, %s25
          %374 = vsyncadd %s368, 0
          %s375 = smul.addr %s372, 4
          %s376 = scalar_lea.hbm %s4, %s375
          %s377 = sshll.u32 %s376, 4
          %s378 = int_to_ptr.hbm [resolvable:$true] %s377
          %s379 = sshll.u32 %s371, 4
          %s380 = int_to_ptr.vmem [resolvable:$true] %s379
          %385 = dma.hbm_to_vmem [thread:$0]  %s378, 2048, %s380, %s368, 1024, 128, 8
        $region44: #{tpu_custom_call.1} parent=31 // pred_fallthru
          _
        // Predicated region
        $region45: #{tpu_custom_call.1} parent=31 // pred_check
          %p386 = pneg %p179
        $region46: #{tpu_custom_call.1} parent=31 // pred_check_branch
          %388 = sbr.rel (%p386) target = $region48
        $region47: #{tpu_custom_call.1} parent=31 // pred_region
          %s389 = sand.u32 %s17, 1
          %s390 = scalar_lea.sflag [#allocation4], %s389
          %s391 = sand.u32 %s169, 1
          %s392 = smul.addr %s391, 2
          %s393 = scalar_lea.vmem [#allocation11], %s392
          %395 = vsyncadd %s390, 0
          %s396 = smul.addr %s25, 2
          %s397 = scalar_lea.hbm %s5, %s396
          %s399 = sshll.u32 %s397, 4
          %s400 = int_to_ptr.hbm [resolvable:$true] %s399
          %s401 = sshll.u32 %s393, 4
          %s402 = int_to_ptr.vmem [resolvable:$true] %s401
          %404 = dma.hbm_to_vmem [thread:$0]  %s400, 32, %s402, %s390
        $region48: #{tpu_custom_call.1} parent=31 // pred_fallthru
          _
      $region32: #{tpu_custom_call.1} parent=5 // pred_fallthru
        _
      %p405 = scmp.le.s32.totalorder 1, %s17
      %p406 = scmp.lt.s32.totalorder %s17, 9
      %p407 = pnand %p405, %p406
      %p408 = pneg %p407
      // Predicated region
      $region49: #{tpu_custom_call.1} parent=5 // pred_check
        _
      $region50: #{tpu_custom_call.1} parent=5 // pred_check_branch
        %410 = sbr.rel (%p407) target = $region52
      $region51: #{tpu_custom_call.1} parent=5 // pred_region
        %s411 = ssub.s32 %s17, 1
        // Predicated region
        $region53: #{tpu_custom_call.1} parent=51 // pred_check
          %p412 = pneg %p55
        $region54: #{tpu_custom_call.1} parent=51 // pred_check_branch
          %414 = sbr.rel (%p412) target = $region56
        $region55: #{tpu_custom_call.1} parent=51 // pred_region
          %416 = dma.done [#allocation4], 128
        $region56: #{tpu_custom_call.1} parent=51 // pred_fallthru
          _
        // Predicated region
        $region57: #{tpu_custom_call.1} parent=51 // pred_check
          %p417 = pneg %p81
        $region58: #{tpu_custom_call.1} parent=51 // pred_check_branch
          %419 = sbr.rel (%p417) target = $region60
        $region59: #{tpu_custom_call.1} parent=51 // pred_region
          %421 = dma.done [#allocation7], 128
        $region60: #{tpu_custom_call.1} parent=51 // pred_fallthru
          _
        %s422 = sand.u32 %s22, 1
        %s423 = scalar_lea.sflag [#allocation4], %s422
        %s424 = sand.u32 %s94, 1
        %s425 = smul.addr %s424, 128
        %s426 = scalar_lea.vmem [#allocation8], %s425
        // Predicated region
        $region61: #{tpu_custom_call.1} parent=51 // pred_check
          %p427 = pneg %p107
        $region62: #{tpu_custom_call.1} parent=51 // pred_check_branch
          %429 = sbr.rel (%p427) target = $region64
        $region63: #{tpu_custom_call.1} parent=51 // pred_region
          %431 = dma.done %s423, 2048
        $region64: #{tpu_custom_call.1} parent=51 // pred_fallthru
          _
        %s432 = sand.u32 %s22, 1
        %s433 = scalar_lea.sflag [#allocation4], %s432
        %s434 = sand.u32 %s120, 1
        %s435 = smul.addr %s434, 2
        %s436 = scalar_lea.vmem [#allocation9], %s435
        // Predicated region
        $region65: #{tpu_custom_call.1} parent=51 // pred_check
          %p437 = pneg %p133
        $region66: #{tpu_custom_call.1} parent=51 // pred_check_branch
          %439 = sbr.rel (%p437) target = $region68
        $region67: #{tpu_custom_call.1} parent=51 // pred_region
          %441 = dma.done %s433, 32
        $region68: #{tpu_custom_call.1} parent=51 // pred_fallthru
          _
        %s442 = sand.u32 %s22, 1
        %s443 = scalar_lea.sflag [#allocation4], %s442
        %s444 = sand.u32 %s146, 1
        %s445 = smul.addr %s444, 128
        %s446 = scalar_lea.vmem [#allocation10], %s445
        // Predicated region
        $region69: #{tpu_custom_call.1} parent=51 // pred_check
          %p447 = pneg %p159
        $region70: #{tpu_custom_call.1} parent=51 // pred_check_branch
          %449 = sbr.rel (%p447) target = $region72
        $region71: #{tpu_custom_call.1} parent=51 // pred_region
          %451 = dma.done %s443, 2048
        $region72: #{tpu_custom_call.1} parent=51 // pred_fallthru
          _
        %s452 = sand.u32 %s22, 1
        %s453 = scalar_lea.sflag [#allocation4], %s452
        %s454 = sand.u32 %s172, 1
        %s455 = smul.addr %s454, 2
        %s456 = scalar_lea.vmem [#allocation11], %s455
        // Predicated region
        $region73: #{tpu_custom_call.1} parent=51 // pred_check
          %p457 = pneg %p185
        $region74: #{tpu_custom_call.1} parent=51 // pred_check_branch
          %459 = sbr.rel (%p457) target = $region76
        $region75: #{tpu_custom_call.1} parent=51 // pred_region
          %461 = dma.done %s453, 32
        $region76: #{tpu_custom_call.1} parent=51 // pred_fallthru
          _
        // Predicated region
        $region77: #{tpu_custom_call.1} parent=51 // pred_check
          %p462 = pneg %p206
        $region78: #{tpu_custom_call.1} parent=51 // pred_check_branch
          %464 = sbr.rel (%p462) target = $region80
        $region79: #{tpu_custom_call.1} parent=51 // pred_region
          %466 = dma.done [#allocation7], 2048
        $region80: #{tpu_custom_call.1} parent=51 // pred_fallthru
          _
        %p467 = pneg %p55
        %p468 = pneg %p52
        %p469 = pneg %p81
        %p470 = pneg %p78
        %s471 = sand.u32 %s22, 1
        %s472 = scalar_lea.sflag [#allocation4], %s471
        %s473 = sand.u32 %s94, 1
        %s474 = smul.addr %s473, 128
        %s475 = scalar_lea.vmem [#allocation8], %s474
        %p476 = pneg %p107
        %p477 = pneg %p104
        %s478 = sand.u32 %s22, 1
        %s479 = scalar_lea.sflag [#allocation4], %s478
        %s480 = sand.u32 %s120, 1
        %s481 = smul.addr %s480, 2
        %s482 = scalar_lea.vmem [#allocation9], %s481
        %p483 = pneg %p133
        %p484 = pneg %p130
        %s485 = sand.u32 %s22, 1
        %s486 = scalar_lea.sflag [#allocation4], %s485
        %s487 = sand.u32 %s146, 1
        %s488 = smul.addr %s487, 128
        %s489 = scalar_lea.vmem [#allocation10], %s488
        %p490 = pneg %p159
        %p491 = pneg %p156
        %s492 = sand.u32 %s22, 1
        %s493 = scalar_lea.sflag [#allocation4], %s492
        %s494 = sand.u32 %s172, 1
        %s495 = smul.addr %s494, 2
        %s496 = scalar_lea.vmem [#allocation11], %s495
        %p497 = pneg %p185
        %p498 = pneg %p182
        %p499 = pneg %p206
        %p500 = pneg %p203
        %p501 = pneg %p227
        %p502 = pneg %p224
        %p503 = pneg %p253
        %p504 = pneg %p250
        %s505 = smul.u32 2, %s26
        %s506 = smul.u32 2, %s26
        %s507 = smul.u32 2, %s27
        %s508 = smul.u32 2, %s27
        %s509 = smul.u32 2, %s26
        %p510 = scmp.eq.s32.totalorder %s27, 0
        // Predicated region
        $region81: #{tpu_custom_call.1} parent=51 // pred_check
          %p511 = pneg %p510
        $region82: #{tpu_custom_call.1} parent=51 // pred_check_branch
          %513 = sbr.rel (%p511) target = $region84
        $region83: #{tpu_custom_call.1} parent=51 // pred_region
          %514 = vst [vmem:[#allocation2] sm:$0xff] 0.0
          %515 = vst [vmem:[#allocation2 + $0x8] sm:$0xff] 0.0
          %516 = vst [vmem:[#allocation2 + $0x10] sm:$0xff] 0.0
          %517 = vst [vmem:[#allocation2 + $0x18] sm:$0xff] 0.0
        $region84: #{tpu_custom_call.1} parent=51 // pred_fallthru
          _
        %v518 = vld [vmem:[#allocation3] sm:$0xf]
        %v519 = vld [vmem:[#allocation3 + $0x4] sm:$0xf]
        %v520 = vld [vmem:[#allocation6] sm:$0xf]
        %v521 = vld [vmem:[#allocation6 + $0x4] sm:$0xf]
        %v522 = vld [vmem:[%s426] sm:$0xff]
        %v523 = vld [vmem:[%s426 + $0x8] sm:$0xff]
        %v524 = vld [vmem:[%s426 + $0x10] sm:$0xff]
        %v525 = vld [vmem:[%s426 + $0x18] sm:$0xff]
        %v526 = vld [vmem:[%s426 + $0x20] sm:$0xff]
        %v527 = vld [vmem:[%s426 + $0x28] sm:$0xff]
        %v528 = vld [vmem:[%s426 + $0x30] sm:$0xff]
        %v529 = vld [vmem:[%s426 + $0x38] sm:$0xff]
        %v530 = vld [vmem:[%s426 + $0x40] sm:$0xff]
        %v531 = vld [vmem:[%s426 + $0x48] sm:$0xff]
        %v532 = vld [vmem:[%s426 + $0x50] sm:$0xff]
        %v533 = vld [vmem:[%s426 + $0x58] sm:$0xff]
        %v534 = vld [vmem:[%s426 + $0x60] sm:$0xff]
        %v535 = vld [vmem:[%s426 + $0x68] sm:$0xff]
        %v536 = vld [vmem:[%s426 + $0x70] sm:$0xff]
        %v537 = vld [vmem:[%s426 + $0x78] sm:$0xff]
        %v538 = vld [vmem:[%s436] sm:$0x3]
        %v540 = vperm.slane %v538, 0
        %v541 = vperm.slane %v538, 1
        %v546 = vunpack.c.l.b16 %v518
        %v547 = vunpack.c.l.b16 %v519
        %v548 = vpack.c.b16 %v547, %v546
        %v566 = vunpack.c.l.b16 %v522
        %v567 = vunpack.c.h.b16 %v522
        %v568 = vunpack.c.l.b16 %v523
        %v569 = vunpack.c.h.b16 %v523
        %v570 = vunpack.c.l.b16 %v524
        %v571 = vunpack.c.h.b16 %v524
        %v572 = vunpack.c.l.b16 %v525
        %v573 = vunpack.c.h.b16 %v525
        %v574 = vunpack.c.l.b16 %v526
        %v575 = vunpack.c.h.b16 %v526
        %v576 = vunpack.c.l.b16 %v527
        %v577 = vunpack.c.h.b16 %v527
        %v578 = vunpack.c.l.b16 %v528
        %v579 = vunpack.c.h.b16 %v528
        %v580 = vunpack.c.l.b16 %v529
        %v581 = vunpack.c.h.b16 %v529
        %v582 = vunpack.c.l.b16 %v530
        %v583 = vunpack.c.h.b16 %v530
        %v584 = vunpack.c.l.b16 %v531
        %v585 = vunpack.c.h.b16 %v531
        %v586 = vunpack.c.l.b16 %v532
        %v587 = vunpack.c.h.b16 %v532
        %v588 = vunpack.c.l.b16 %v533
        %v589 = vunpack.c.h.b16 %v533
        %v590 = vunpack.c.l.b16 %v534
        %v591 = vunpack.c.h.b16 %v534
        %v592 = vunpack.c.l.b16 %v535
        %v593 = vunpack.c.h.b16 %v535
        %v594 = vunpack.c.l.b16 %v536
        %v595 = vunpack.c.h.b16 %v536
        %v596 = vunpack.c.l.b16 %v537
        %v597 = vunpack.c.h.b16 %v537
        %v598 = vpack.c.b16 %v568, %v566
        %v599 = vpack.c.b16 %v569, %v567
        %v600 = vpack.c.b16 %v572, %v570
        %v601 = vpack.c.b16 %v573, %v571
        %v602 = vpack.c.b16 %v576, %v574
        %v603 = vpack.c.b16 %v577, %v575
        %v604 = vpack.c.b16 %v580, %v578
        %v605 = vpack.c.b16 %v581, %v579
        %v606 = vpack.c.b16 %v584, %v582
        %v607 = vpack.c.b16 %v585, %v583
        %v608 = vpack.c.b16 %v588, %v586
        %v609 = vpack.c.b16 %v589, %v587
        %v610 = vpack.c.b16 %v592, %v590
        %v611 = vpack.c.b16 %v593, %v591
        %v612 = vpack.c.b16 %v596, %v594
        %v613 = vpack.c.b16 %v597, %v595
        %630 = vmatpush.bf16.msra.mxu0 %v612
        %631 = vmatpush.bf16.msra.mxu0 %v610
        %632 = vmatpush.bf16.msra.mxu0 %v608
        %633 = vmatpush.bf16.msra.mxu0 %v606
        %634 = vmatpush.bf16.msra.mxu0 %v604
        %635 = vmatpush.bf16.msra.mxu0 %v602
        %636 = vmatpush.bf16.msra.mxu0 %v600
        %637 = vmatpush.bf16.msra.mxu0 %v598
        %638 = vmatmul.bf16.gmra.mxu0 %v548
        %v639 = vpop.f32.mrf.mxu0
        %v640 = vadd.f32 %v540, %v639
        %v641 = vpop.f32.mrf.mxu0
        %v642 = vadd.f32 %v540, %v641
        %643 = vdwg.mxu0
        %644 = vmatpush.bf16.msra.mxu0 %v613
        %645 = vmatpush.bf16.msra.mxu0 %v611
        %646 = vmatpush.bf16.msra.mxu0 %v609
        %647 = vmatpush.bf16.msra.mxu0 %v607
        %648 = vmatpush.bf16.msra.mxu0 %v605
        %649 = vmatpush.bf16.msra.mxu0 %v603
        %650 = vmatpush.bf16.msra.mxu0 %v601
        %651 = vmatpush.bf16.msra.mxu0 %v599
        %652 = vmatmul.bf16.gmra.mxu0 %v548
        %v653 = vpop.f32.mrf.mxu0
        %v654 = vadd.f32 %v541, %v653
        %v655 = vpop.f32.mrf.mxu0
        %v656 = vadd.f32 %v541, %v655
        %657 = vdwg.mxu0
        %v658 = vld [vmem:[%s446] sm:$0xff]
        %v659 = vld [vmem:[%s446 + $0x8] sm:$0xff]
        %v660 = vld [vmem:[%s446 + $0x10] sm:$0xff]
        %v661 = vld [vmem:[%s446 + $0x18] sm:$0xff]
        %v662 = vld [vmem:[%s446 + $0x20] sm:$0xff]
        %v663 = vld [vmem:[%s446 + $0x28] sm:$0xff]
        %v664 = vld [vmem:[%s446 + $0x30] sm:$0xff]
        %v665 = vld [vmem:[%s446 + $0x38] sm:$0xff]
        %v666 = vld [vmem:[%s446 + $0x40] sm:$0xff]
        %v667 = vld [vmem:[%s446 + $0x48] sm:$0xff]
        %v668 = vld [vmem:[%s446 + $0x50] sm:$0xff]
        %v669 = vld [vmem:[%s446 + $0x58] sm:$0xff]
        %v670 = vld [vmem:[%s446 + $0x60] sm:$0xff]
        %v671 = vld [vmem:[%s446 + $0x68] sm:$0xff]
        %v672 = vld [vmem:[%s446 + $0x70] sm:$0xff]
        %v673 = vld [vmem:[%s446 + $0x78] sm:$0xff]
        %v674 = vld [vmem:[%s456] sm:$0x3]
        %v676 = vperm.slane %v674, 0
        %v677 = vperm.slane %v674, 1
        %v682 = vunpack.c.l.b16 %v520
        %v683 = vunpack.c.l.b16 %v521
        %v684 = vpack.c.b16 %v683, %v682
        %v702 = vunpack.c.l.b16 %v658
        %v703 = vunpack.c.h.b16 %v658
        %v704 = vunpack.c.l.b16 %v659
        %v705 = vunpack.c.h.b16 %v659
        %v706 = vunpack.c.l.b16 %v660
        %v707 = vunpack.c.h.b16 %v660
        %v708 = vunpack.c.l.b16 %v661
        %v709 = vunpack.c.h.b16 %v661
        %v710 = vunpack.c.l.b16 %v662
        %v711 = vunpack.c.h.b16 %v662
        %v712 = vunpack.c.l.b16 %v663
        %v713 = vunpack.c.h.b16 %v663
        %v714 = vunpack.c.l.b16 %v664
        %v715 = vunpack.c.h.b16 %v664
        %v716 = vunpack.c.l.b16 %v665
        %v717 = vunpack.c.h.b16 %v665
        %v718 = vunpack.c.l.b16 %v666
        %v719 = vunpack.c.h.b16 %v666
        %v720 = vunpack.c.l.b16 %v667
        %v721 = vunpack.c.h.b16 %v667
        %v722 = vunpack.c.l.b16 %v668
        %v723 = vunpack.c.h.b16 %v668
        %v724 = vunpack.c.l.b16 %v669
        %v725 = vunpack.c.h.b16 %v669
        %v726 = vunpack.c.l.b16 %v670
        %v727 = vunpack.c.h.b16 %v670
        %v728 = vunpack.c.l.b16 %v671
        %v729 = vunpack.c.h.b16 %v671
        %v730 = vunpack.c.l.b16 %v672
        %v731 = vunpack.c.h.b16 %v672
        %v732 = vunpack.c.l.b16 %v673
        %v733 = vunpack.c.h.b16 %v673
        %v734 = vpack.c.b16 %v704, %v702
        %v735 = vpack.c.b16 %v705, %v703
        %v736 = vpack.c.b16 %v708, %v706
        %v737 = vpack.c.b16 %v709, %v707
        %v738 = vpack.c.b16 %v712, %v710
        %v739 = vpack.c.b16 %v713, %v711
        %v740 = vpack.c.b16 %v716, %v714
        %v741 = vpack.c.b16 %v717, %v715
        %v742 = vpack.c.b16 %v720, %v718
        %v743 = vpack.c.b16 %v721, %v719
        %v744 = vpack.c.b16 %v724, %v722
        %v745 = vpack.c.b16 %v725, %v723
        %v746 = vpack.c.b16 %v728, %v726
        %v747 = vpack.c.b16 %v729, %v727
        %v748 = vpack.c.b16 %v732, %v730
        %v749 = vpack.c.b16 %v733, %v731
        %766 = vmatpush.bf16.msra.mxu0 %v748
        %767 = vmatpush.bf16.msra.mxu0 %v746
        %768 = vmatpush.bf16.msra.mxu0 %v744
        %769 = vmatpush.bf16.msra.mxu0 %v742
        %770 = vmatpush.bf16.msra.mxu0 %v740
        %771 = vmatpush.bf16.msra.mxu0 %v738
        %772 = vmatpush.bf16.msra.mxu0 %v736
        %773 = vmatpush.bf16.msra.mxu0 %v734
        %774 = vmatmul.bf16.gmra.mxu0 %v684
        %v775 = vpop.f32.mrf.mxu0
        %v776 = vadd.f32 %v676, %v775
        %v777 = vpop.f32.mrf.mxu0
        %v778 = vadd.f32 %v676, %v777
        %779 = vdwg.mxu0
        %780 = vmatpush.bf16.msra.mxu0 %v749
        %781 = vmatpush.bf16.msra.mxu0 %v747
        %782 = vmatpush.bf16.msra.mxu0 %v745
        %783 = vmatpush.bf16.msra.mxu0 %v743
        %784 = vmatpush.bf16.msra.mxu0 %v741
        %785 = vmatpush.bf16.msra.mxu0 %v739
        %786 = vmatpush.bf16.msra.mxu0 %v737
        %787 = vmatpush.bf16.msra.mxu0 %v735
        %788 = vmatmul.bf16.gmra.mxu0 %v684
        %v789 = vpop.f32.mrf.mxu0
        %v790 = vadd.f32 %v677, %v789
        %v791 = vpop.f32.mrf.mxu0
        %v792 = vadd.f32 %v677, %v791
        %793 = vdwg.mxu0
        %v794 = vld [vmem:[#allocation2] sm:$0xff]
        %v795 = vld [vmem:[#allocation2 + $0x8] sm:$0xff]
        %v796 = vld [vmem:[#allocation2 + $0x10] sm:$0xff]
        %v797 = vld [vmem:[#allocation2 + $0x18] sm:$0xff]
        %v798 = vmul.f32 %v776, %v640
        %v799 = vmul.f32 %v790, %v654
        %v800 = vmul.f32 %v778, %v642
        %v801 = vmul.f32 %v792, %v656
        %v802 = vadd.f32 %v794, %v798
        %v803 = vadd.f32 %v795, %v799
        %v804 = vadd.f32 %v796, %v800
        %v805 = vadd.f32 %v797, %v801
        %806 = vst [vmem:[#allocation2] sm:$0xff] %v802
        %807 = vst [vmem:[#allocation2 + $0x8] sm:$0xff] %v803
        %808 = vst [vmem:[#allocation2 + $0x10] sm:$0xff] %v804
        %809 = vst [vmem:[#allocation2 + $0x18] sm:$0xff] %v805
        %p810 = scmp.eq.s32.totalorder %s27, 7
        // Predicated region
        $region85: #{tpu_custom_call.1} parent=51 // pred_check
          %p811 = pneg %p810
        $region86: #{tpu_custom_call.1} parent=51 // pred_check_branch
          %813 = sbr.rel (%p811) target = $region88
        $region87: #{tpu_custom_call.1} parent=51 // pred_region
          %v814 = vld [vmem:[#allocation2] sm:$0xff]
          %v815 = vld [vmem:[#allocation2 + $0x8] sm:$0xff]
          %v816 = vld [vmem:[#allocation2 + $0x10] sm:$0xff]
          %v817 = vld [vmem:[#allocation2 + $0x18] sm:$0xff]
          %v818 = vmul.f32 %v814, 0.125
          %v819 = vmul.f32 %v815, 0.125
          %v820 = vmul.f32 %v816, 0.125
          %v821 = vmul.f32 %v817, 0.125
          %v822 = vmul.f32 %v818, %v818
          %v823 = vmul.f32 %v819, %v819
          %v824 = vmul.f32 %v820, %v820
          %v825 = vmul.f32 %v821, %v821
          %v826 = vadd.f32 %v822, %v823
          %827 = vadd.xlane.f32.xlu0 %v826
          %v828 = vpop.xlane.xlu0 %827
          %v829 = vadd.f32 %v824, %v825
          %830 = vadd.xlane.f32.xlu0 %v829
          %v831 = vpop.xlane.xlu0 %830
          %v832 = vmax.f32 %v828, 1e-24
          %v833 = vmax.f32 %v831, 1e-24
          %v834 = vrsqrt.pop %v832
          %v835 = vmul.f32 %v834, %v832
          %v836 = vmul.f32 %v835, %v834
          %v837 = vmul.f32 0.5, %v836
          %v838 = vsub.f32 1.5, %v837
          %v839 = vmul.f32 %v834, %v838
          %vm840 = vweird.f32 %v832
          %vm841 = vweird.f32 %v834
          %vm842 = vmor %vm840, %vm841
          %v843 = vsel %vm842, %v834, %v839
          %v844 = vrsqrt.pop %v833
          %v845 = vmul.f32 %v844, %v833
          %v846 = vmul.f32 %v845, %v844
          %v847 = vmul.f32 0.5, %v846
          %v848 = vsub.f32 1.5, %v847
          %v849 = vmul.f32 %v844, %v848
          %vm850 = vweird.f32 %v833
          %vm851 = vweird.f32 %v844
          %vm852 = vmor %vm850, %vm851
          %v853 = vsel %vm852, %v844, %v849
          %v854 = vmul.f32 %v818, %v843
          %v855 = vmul.f32 %v819, %v843
          %v856 = vmul.f32 %v820, %v853
          %v857 = vmul.f32 %v821, %v853
          %v858 = vpack.c.bf16 %v856, %v854
          %v859 = vpack.c.bf16 %v857, %v855
          %v860 = vld [vmem:[#allocation12] sm:$0xf]
          %v861 = vld [vmem:[#allocation12 + $0x4] sm:$0xf]
          %v862 = vld [vmem:[#allocation12 + $0x8] sm:$0xf]
          %v863 = vld [vmem:[#allocation12 + $0xc] sm:$0xf]
          %v864 = vld [vmem:[#allocation12 + $0x10] sm:$0xf]
          %v865 = vld [vmem:[#allocation12 + $0x14] sm:$0xf]
          %v866 = vld [vmem:[#allocation12 + $0x18] sm:$0xf]
          %v867 = vld [vmem:[#allocation12 + $0x1c] sm:$0xf]
          %v868 = vld [vmem:[#allocation12 + $0x20] sm:$0xf]
          %v869 = vld [vmem:[#allocation12 + $0x24] sm:$0xf]
          %v870 = vld [vmem:[#allocation12 + $0x28] sm:$0xf]
          %v871 = vld [vmem:[#allocation12 + $0x2c] sm:$0xf]
          %v872 = vld [vmem:[#allocation12 + $0x30] sm:$0xf]
          %v873 = vld [vmem:[#allocation12 + $0x34] sm:$0xf]
          %v874 = vld [vmem:[#allocation12 + $0x38] sm:$0xf]
          %v875 = vld [vmem:[#allocation12 + $0x3c] sm:$0xf]
          %v876 = vld [vmem:[#allocation12 + $0x40] sm:$0xf]
          %v877 = vld [vmem:[#allocation12 + $0x44] sm:$0xf]
          %v878 = vld [vmem:[#allocation12 + $0x48] sm:$0xf]
          %v879 = vld [vmem:[#allocation12 + $0x4c] sm:$0xf]
          %v880 = vld [vmem:[#allocation12 + $0x50] sm:$0xf]
          %v881 = vld [vmem:[#allocation12 + $0x54] sm:$0xf]
          %v882 = vld [vmem:[#allocation12 + $0x58] sm:$0xf]
          %v883 = vld [vmem:[#allocation12 + $0x5c] sm:$0xf]
          %v884 = vld [vmem:[#allocation12 + $0x60] sm:$0xf]
          %v885 = vld [vmem:[#allocation12 + $0x64] sm:$0xf]
          %v886 = vld [vmem:[#allocation12 + $0x68] sm:$0xf]
          %v887 = vld [vmem:[#allocation12 + $0x6c] sm:$0xf]
          %v888 = vld [vmem:[#allocation12 + $0x70] sm:$0xf]
          %v889 = vld [vmem:[#allocation12 + $0x74] sm:$0xf]
          %v890 = vld [vmem:[#allocation12 + $0x78] sm:$0xf]
          %v891 = vld [vmem:[#allocation12 + $0x7c] sm:$0xf]
          %v892 = vld [vmem:[%s7] sm:$0x1]
          %v894 = vperm.slane %v892, 0
          %v928 = vunpack.c.l.b16 %v860
          %v929 = vunpack.c.l.b16 %v861
          %v930 = vunpack.c.l.b16 %v862
          %v931 = vunpack.c.l.b16 %v863
          %v932 = vunpack.c.l.b16 %v864
          %v933 = vunpack.c.l.b16 %v865
          %v934 = vunpack.c.l.b16 %v866
          %v935 = vunpack.c.l.b16 %v867
          %v936 = vunpack.c.l.b16 %v868
          %v937 = vunpack.c.l.b16 %v869
          %v938 = vunpack.c.l.b16 %v870
          %v939 = vunpack.c.l.b16 %v871
          %v940 = vunpack.c.l.b16 %v872
          %v941 = vunpack.c.l.b16 %v873
          %v942 = vunpack.c.l.b16 %v874
          %v943 = vunpack.c.l.b16 %v875
          %v944 = vunpack.c.l.b16 %v876
          %v945 = vunpack.c.l.b16 %v877
          %v946 = vunpack.c.l.b16 %v878
          %v947 = vunpack.c.l.b16 %v879
          %v948 = vunpack.c.l.b16 %v880
          %v949 = vunpack.c.l.b16 %v881
          %v950 = vunpack.c.l.b16 %v882
          %v951 = vunpack.c.l.b16 %v883
          %v952 = vunpack.c.l.b16 %v884
          %v953 = vunpack.c.l.b16 %v885
          %v954 = vunpack.c.l.b16 %v886
          %v955 = vunpack.c.l.b16 %v887
          %v956 = vunpack.c.l.b16 %v888
          %v957 = vunpack.c.l.b16 %v889
          %v958 = vunpack.c.l.b16 %v890
          %v959 = vunpack.c.l.b16 %v891
          %v960 = vpack.c.b16 %v929, %v928
          %v961 = vpack.c.b16 %v931, %v930
          %v962 = vpack.c.b16 %v933, %v932
          %v963 = vpack.c.b16 %v935, %v934
          %v964 = vpack.c.b16 %v937, %v936
          %v965 = vpack.c.b16 %v939, %v938
          %v966 = vpack.c.b16 %v941, %v940
          %v967 = vpack.c.b16 %v943, %v942
          %v968 = vpack.c.b16 %v945, %v944
          %v969 = vpack.c.b16 %v947, %v946
          %v970 = vpack.c.b16 %v949, %v948
          %v971 = vpack.c.b16 %v951, %v950
          %v972 = vpack.c.b16 %v953, %v952
          %v973 = vpack.c.b16 %v955, %v954
          %v974 = vpack.c.b16 %v957, %v956
          %v975 = vpack.c.b16 %v959, %v958
          %992 = vmatpush.bf16.msra.mxu0 %v967
          %993 = vmatpush.bf16.msra.mxu0 %v966
          %994 = vmatpush.bf16.msra.mxu0 %v965
          %995 = vmatpush.bf16.msra.mxu0 %v964
          %996 = vmatpush.bf16.msra.mxu0 %v963
          %997 = vmatpush.bf16.msra.mxu0 %v962
          %998 = vmatpush.bf16.msra.mxu0 %v961
          %999 = vmatpush.bf16.msra.mxu0 %v960
          %1000 = vmatmul.bf16.gmra.mxu0 %v858
          %v1001 = vpop.f32.mrf.mxu0
          %v1002 = vadd.f32 %v894, %v1001
          %v1003 = vpop.f32.mrf.mxu0
          %v1004 = vadd.f32 %v894, %v1003
          %1005 = vdwg.mxu0
          %1006 = vmatpush.bf16.msra.mxu0 %v975
          %1007 = vmatpush.bf16.msra.mxu0 %v974
          %1008 = vmatpush.bf16.msra.mxu0 %v973
          %1009 = vmatpush.bf16.msra.mxu0 %v972
          %1010 = vmatpush.bf16.msra.mxu0 %v971
          %1011 = vmatpush.bf16.msra.mxu0 %v970
          %1012 = vmatpush.bf16.msra.mxu0 %v969
          %1013 = vmatpush.bf16.msra.mxu0 %v968
          %1014 = vmatmul.bf16.gmra.mxu0 %v859
          %v1015 = vpop.f32.mrf.mxu0
          %v1016 = vadd.f32 %v1002, %v1015
          %v1017 = vpop.f32.mrf.mxu0
          %v1018 = vadd.f32 %v1004, %v1017
          %1019 = vdwg.mxu0
          %v1020 = vlaneseq
          %v1021 = vand.u32 %v1020, 127
          %vm1022 = vcmp.lt.s32.totalorder %v1021, 8
          %v1023 = vsel %vm1022, %v1016, -1e+30
          %v1024 = vsel %vm1022, %v1018, -1e+30
          %1025 = vmax.xlane.f32.xlu0 %v1023
          %v1026 = vpop.xlane.xlu0 %1025
          %1027 = vmax.xlane.f32.xlu0 %v1024
          %v1028 = vpop.xlane.xlu0 %1027
          %v1029 = vsub.f32 %v1023, %v1026
          %v1030 = vsub.f32 %v1024, %v1028
          %v1031 = vmul.f32 %v1029, 1.442695
          %v1032 = vpow.pop %v1031
          %v1033 = vmul.f32 %v1030, 1.442695
          %v1034 = vpow.pop %v1033
          %1035 = vadd.xlane.f32.xlu0 %v1032
          %v1036 = vpop.xlane.xlu0 %1035
          %1037 = vadd.xlane.f32.xlu0 %v1034
          %v1038 = vpop.xlane.xlu0 %1037
          %v1039 = vrcp.pop %v1036
          %v1040 = vrcp.pop %v1038
          %v1041 = vmul.f32 %v1032, %v1039
          %v1042 = vmul.f32 %v1034, %v1040
          %1043 = vst [vmem:[#allocation13] sm:$0xff] %v1041
          %1044 = vst [vmem:[#allocation13 + $0x8] sm:$0xff] %v1042
        $region88: #{tpu_custom_call.1} parent=51 // pred_fallthru
          _
        // Predicated region
        $region89: #{tpu_custom_call.1} parent=51 // pred_check
          %p1045 = pneg %p250
        $region90: #{tpu_custom_call.1} parent=51 // pred_check_branch
          %1047 = sbr.rel (%p1045) target = $region92
        $region91: #{tpu_custom_call.1} parent=51 // pred_region
          %s1048 = smul.u32 2, %s26
          %1050 = vsyncadd [#allocation5], 0
          %s1051 = smul.addr %s1048, 8
          %s1052 = scalar_lea.hbm %s8, %s1051
          %s1053 = sshll.u32 [#allocation13], 4
          %s1054 = int_to_ptr.vmem [resolvable:$true] %s1053
          %s1055 = sshll.u32 %s1052, 4
          %s1056 = int_to_ptr.hbm [resolvable:$true] %s1055
          %1061 = dma.vmem_to_hbm [thread:$0]  %s1054, 256, %s1056, [#allocation5], 128, 128, 8
        $region92: #{tpu_custom_call.1} parent=51 // pred_fallthru
          _
        // Predicated region
        $region93: #{tpu_custom_call.1} parent=51 // pred_check
          %p1062 = pneg %p250
        $region94: #{tpu_custom_call.1} parent=51 // pred_check_branch
          %1064 = sbr.rel (%p1062) target = $region96
        $region95: #{tpu_custom_call.1} parent=51 // pred_region
          %1066 = dma.done [#allocation5], 256
        $region96: #{tpu_custom_call.1} parent=51 // pred_fallthru
          _
      $region52: #{tpu_custom_call.1} parent=5 // pred_fallthru
        _
      %p1067 = scmp.le.s32.totalorder 2, %s17
      // Predicated region
      $region97: #{tpu_custom_call.1} parent=5 // pred_check
        %p1068 = pneg %p1067
      $region98: #{tpu_custom_call.1} parent=5 // pred_check_branch
        %1070 = sbr.rel (%p1068) target = $region100
      $region99: #{tpu_custom_call.1} parent=5 // pred_region
        %s1071 = ssub.s32 %s17, 2
      $region100: #{tpu_custom_call.1} parent=5 // pred_fallthru
        _
    $region6: #{tpu_custom_call.1} parent=1 // loop_footer
      %s21 = sadd.s32 1, %s17
    $region7: #{tpu_custom_call.1} parent=1 // loop_footer_branch
      %16 = sbr.rel target = $region3
    $region8: #{tpu_custom_call.1} parent=1 // loop_exit
      _
    %1072 = vsyncpa [#allocation4], 1
    %s1073 = scalar_lea.sflag [#allocation4], 1
    %1074 = vsyncpa %s1073, 1
    %1075 = vsyncpa [#allocation7], 1
    %1076 = vsyncpa [#allocation5], 1
    %s1077 = scalar_lea.sflag [#allocation5], 1
    %1078 = vsyncpa %s1077, 1

</llo_original>
